<compile_context>
chip_gen: v7x
topology: tpu7x:2x2x1
jax: 0.10.0
libtpu: 0.0.40
codegen_flags: <defaults>
</compile_context>

<pallas_src>
import functools

import jax
import jax.numpy as jnp
from jax.experimental import pallas as pl
from jax.experimental.pallas import tpu as pltpu


def rpn_loss_kernel(cls_pred_ref, cls_tgt_ref, cls_mask_ref,
                    reg_pred_ref, reg_tgt_ref, reg_mask_ref,
                    out_ref, acc_ref, *, inv_n, inv_nd):
    """One grid step over a (·, TN) lane-dense slice of the anchors.

    cls_pred_ref : (C, TN)   logits, native dtype
    cls_tgt_ref  : (1, TN)   int32 class ids
    cls_mask_ref : (1, TN)   mask
    reg_pred_ref : (D, TN)   box regression predictions
    reg_tgt_ref  : (D, TN)   box regression targets
    reg_mask_ref : (1, TN)   mask
    out_ref      : (3,)      SMEM [loss, c_loss_mask_mean, r_loss_mask_mean]
    acc_ref      : (2,)      SMEM running sums [sum_c, sum_r]
    """
    step = pl.program_id(0)

    @pl.when(step == 0)
    def _init():
        acc_ref[0] = 0.0
        acc_ref[1] = 0.0

    n_cls = cls_pred_ref.shape[0]
    n_dim = reg_pred_ref.shape[0]

    tgt = cls_tgt_ref[...]                                   # (1, TN) int32
    cmask = cls_mask_ref[...].astype(jnp.float32)            # (1, TN)

    # --- CrossEntropyLoss(reduce=False): lse(logits) - logits[target] -------
    # Unrolled per-class rows: every op is a (1, TN) VPU/EUP op, no XLU
    # reduces over a lane-padded class axis.
    rows = [cls_pred_ref[r:r + 1, :].astype(jnp.float32) for r in range(n_cls)]

    m = rows[0]
    for r in range(1, n_cls):
        m = jnp.maximum(m, rows[r])
    s = jnp.exp(rows[0] - m)
    for r in range(1, n_cls):
        s = s + jnp.exp(rows[r] - m)
    lse = m + jnp.log(s)                                     # (1, TN)

    # picked = logits[target] via a short select chain (no iota / one-hot).
    picked = rows[n_cls - 1]
    for r in range(n_cls - 2, -1, -1):
        picked = jnp.where(tgt == r, rows[r], picked)

    c_partial = jnp.sum((lse - picked) * cmask)              # scalar

    # --- SmoothL1Loss(reduce=False), mean over coords, masked --------------
    rmask = reg_mask_ref[...].astype(jnp.float32)            # (1, TN)
    r_sum = None
    for r in range(n_dim):
        d_r = (reg_pred_ref[r:r + 1, :].astype(jnp.float32)
               - reg_tgt_ref[r:r + 1, :].astype(jnp.float32))
        ad = jnp.abs(d_r)
        sl1 = jnp.where(ad < 1.0, 0.5 * d_r * d_r, ad - 0.5)
        r_sum = sl1 if r_sum is None else r_sum + sl1        # (1, TN)

    r_partial = jnp.sum(r_sum * rmask)                       # scalar (1/D folded later)

    acc_ref[0] += c_partial
    acc_ref[1] += r_partial

    @pl.when(step == pl.num_programs(0) - 1)
    def _finalize():
        c_mean = acc_ref[0] * inv_n
        r_mean = acc_ref[1] * inv_nd
        out_ref[0] = c_mean + r_mean
        out_ref[1] = c_mean
        out_ref[2] = r_mean


def _as_float(x):
    if jnp.issubdtype(x.dtype, jnp.floating):
        return x
    return x.astype(jnp.float32)


def rpn_loss(cls_predict, cls_target, cls_mask,
             reg_predict, reg_target, reg_mask, *, tile_n=2048):
    """Matches RPN_Loss.forward: returns (loss, c_loss_mask_mean, r_loss_mask_mean)."""
    n, c = cls_predict.shape
    _, d = reg_predict.shape

    # Lane-dense layout: put N on the 128-lane axis (wrapper-side transpose).
    cls_pred_t = cls_predict.T                               # (C, N)
    reg_pred_t = reg_predict.T                               # (D, N)
    reg_tgt_t = reg_target.T                                 # (D, N)
    cls_tgt_row = cls_target.reshape(1, n).astype(jnp.int32)
    cls_mask_row = _as_float(cls_mask).reshape(1, n)
    reg_mask_row = _as_float(reg_mask).reshape(1, n)

    # Tile width on the lane axis (multiple of 128); pad N with zero-mask lanes.
    lane = 128
    tn = min(int(tile_n), pl.cdiv(n, lane) * lane)
    tn = pl.cdiv(tn, lane) * lane
    n_pad = pl.cdiv(n, tn) * tn
    pad = n_pad - n
    if pad:
        cls_pred_t = jnp.pad(cls_pred_t, ((0, 0), (0, pad)))
        reg_pred_t = jnp.pad(reg_pred_t, ((0, 0), (0, pad)))
        reg_tgt_t = jnp.pad(reg_tgt_t, ((0, 0), (0, pad)))
        cls_tgt_row = jnp.pad(cls_tgt_row, ((0, 0), (0, pad)))
        cls_mask_row = jnp.pad(cls_mask_row, ((0, 0), (0, pad)))
        reg_mask_row = jnp.pad(reg_mask_row, ((0, 0), (0, pad)))

    steps = n_pad // tn
    kernel = functools.partial(rpn_loss_kernel,
                               inv_n=1.0 / float(n),
                               inv_nd=1.0 / float(n * d))

    out = pl.pallas_call(
        kernel,
        out_shape=jax.ShapeDtypeStruct((3,), jnp.float32),
        grid_spec=pltpu.PrefetchScalarGridSpec(
            num_scalar_prefetch=0,
            grid=(steps,),
            in_specs=[
                pl.BlockSpec((c, tn), lambda i: (0, i)),
                pl.BlockSpec((1, tn), lambda i: (0, i)),
                pl.BlockSpec((1, tn), lambda i: (0, i)),
                pl.BlockSpec((d, tn), lambda i: (0, i)),
                pl.BlockSpec((d, tn), lambda i: (0, i)),
                pl.BlockSpec((1, tn), lambda i: (0, i)),
            ],
            out_specs=pl.BlockSpec(memory_space=pltpu.MemorySpace.SMEM),
            scratch_shapes=[pltpu.SMEM((2,), jnp.float32)],
        ),
        compiler_params=pltpu.CompilerParams(
            dimension_semantics=("arbitrary",)),   # reduction axis
    )(cls_pred_t, cls_tgt_row, cls_mask_row, reg_pred_t, reg_tgt_t, reg_mask_row)

    return out[0], out[1], out[2]


def _reference(cls_predict, cls_target, cls_mask, reg_predict, reg_target, reg_mask):
    # Pure-JAX reference matching the PyTorch module semantics.
    lse = jax.nn.logsumexp(cls_predict.astype(jnp.float32), axis=-1)
    picked = jnp.take_along_axis(cls_predict.astype(jnp.float32),
                                 cls_target[:, None], axis=-1)[:, 0]
    c_loss = lse - picked
    c_mean = jnp.mean(c_loss * cls_mask.astype(jnp.float32))
    diff = reg_predict.astype(jnp.float32) - reg_target.astype(jnp.float32)
    ad = jnp.abs(diff)
    sl1 = jnp.where(ad < 1.0, 0.5 * diff * diff, ad - 0.5)
    r_mean = jnp.mean(jnp.mean(sl1, axis=1) * reg_mask.astype(jnp.float32))
    return c_mean + r_mean, c_mean, r_mean


if __name__ == "__main__":
    key = jax.random.PRNGKey(0)

    def make_inputs(n, c, d, k):
        k1, k2, k3, k4, k5, k6 = jax.random.split(k, 6)
        cls_predict = jax.random.normal(k1, (n, c), dtype=jnp.float32)
        cls_target = jax.random.randint(k2, (n,), 0, c, dtype=jnp.int32)
        cls_mask = (jax.random.uniform(k3, (n,)) > 0.5).astype(jnp.float32)
        reg_predict = jax.random.normal(k4, (n, d), dtype=jnp.float32)
        reg_target = jax.random.normal(k5, (n, d), dtype=jnp.float32)
        reg_mask = (jax.random.uniform(k6, (n,)) > 0.5).astype(jnp.float32)
        return cls_predict, cls_target, cls_mask, reg_predict, reg_target, reg_mask

    k_a, k_b = jax.random.split(key)

    # Case 1: small anchor count, single grid step (N=128, C=D=4).
    args = make_inputs(128, 4, 4, k_a)
    out = rpn_loss(*args)
    jax.block_until_ready(out)
    ref = _reference(*args)
    for o, r in zip(out, ref):
        assert jnp.allclose(o, r, atol=1e-5, rtol=1e-4), (o, r)

    # Case 2: multi-step grid with lane padding (N=640, tile 256 -> 3 steps).
    args = make_inputs(640, 4, 4, k_b)
    out = rpn_loss(*args, tile_n=256)
    jax.block_until_ready(out)
    ref = _reference(*args)
    for o, r in zip(out, ref):
        assert jnp.allclose(o, r, atol=1e-5, rtol=1e-4), (o, r)

    print("KERNEL_OK")
</pallas_src>

<mosaic_0001>
module attributes {stable_mosaic.version = 11 : i64} {
  func.func @rpn_loss_kernel(%arg0: i32, %arg1: memref<4x128xf32, #tpu.memory_space<vmem>>, %arg2: memref<1x128xi32, #tpu.memory_space<vmem>>, %arg3: memref<1x128xf32, #tpu.memory_space<vmem>>, %arg4: memref<4x128xf32, #tpu.memory_space<vmem>>, %arg5: memref<4x128xf32, #tpu.memory_space<vmem>>, %arg6: memref<1x128xf32, #tpu.memory_space<vmem>>, %arg7: memref<3xf32, #tpu.memory_space<smem>>, %arg8: memref<2xf32, #tpu.memory_space<smem>>) attributes {dimension_semantics = [#tpu.dimension_semantics<arbitrary>], iteration_bounds = array<i64: 1>, scalar_prefetch = 0 : i64, scratch_operands = 1 : i64, tpu.core_type = #tpu.core_type<tc>, window_params = [{transform_indices = @transform_0, window_bounds = array<i64: 4, 128>}, {transform_indices = @transform_1, window_bounds = array<i64: 1, 128>}, {transform_indices = @transform_2, window_bounds = array<i64: 1, 128>}, {transform_indices = @transform_3, window_bounds = array<i64: 4, 128>}, {transform_indices = @transform_4, window_bounds = array<i64: 4, 128>}, {transform_indices = @transform_5, window_bounds = array<i64: 1, 128>}, {transform_indices = @transform_6, window_bounds = array<i64: 3>}]} {
    %c0_i32 = arith.constant 0 : i32
    %0 = arith.cmpi eq, %arg0, %c0_i32 : i32
    %1 = arith.extui %0 : i1 to i32
    %c0_i32_0 = arith.constant 0 : i32
    %2 = arith.cmpi ne, %1, %c0_i32_0 : i32
    scf.if %2 {
      %cst_47 = arith.constant 0.000000e+00 : f32
      %c0_48 = arith.constant 0 : index
      %106 = memref.load %arg8[%c0_48] : memref<2xf32, #tpu.memory_space<smem>>
      memref.store %cst_47, %arg8[%c0_48] : memref<2xf32, #tpu.memory_space<smem>>
      %cst_49 = arith.constant 0.000000e+00 : f32
      %c1_50 = arith.constant 1 : index
      %107 = memref.load %arg8[%c1_50] : memref<2xf32, #tpu.memory_space<smem>>
      memref.store %cst_49, %arg8[%c1_50] : memref<2xf32, #tpu.memory_space<smem>>
    } else {
    }
    %c0 = arith.constant 0 : index
    %c0_1 = arith.constant 0 : index
    %3 = vector.load %arg2[%c0, %c0_1] : memref<1x128xi32, #tpu.memory_space<vmem>>, vector<1x128xi32>
    %c0_2 = arith.constant 0 : index
    %c0_3 = arith.constant 0 : index
    %4 = vector.load %arg3[%c0_2, %c0_3] : memref<1x128xf32, #tpu.memory_space<vmem>>, vector<1x128xf32>
    %c0_4 = arith.constant 0 : index
    %c0_5 = arith.constant 0 : index
    %5 = vector.load %arg1[%c0_4, %c0_5] : memref<4x128xf32, #tpu.memory_space<vmem>>, vector<1x128xf32>
    %c1 = arith.constant 1 : index
    %c0_6 = arith.constant 0 : index
    %6 = vector.load %arg1[%c1, %c0_6] : memref<4x128xf32, #tpu.memory_space<vmem>>, vector<1x128xf32>
    %c2 = arith.constant 2 : index
    %c0_7 = arith.constant 0 : index
    %7 = vector.load %arg1[%c2, %c0_7] : memref<4x128xf32, #tpu.memory_space<vmem>>, vector<1x128xf32>
    %c3 = arith.constant 3 : index
    %c0_8 = arith.constant 0 : index
    %8 = vector.load %arg1[%c3, %c0_8] : memref<4x128xf32, #tpu.memory_space<vmem>>, vector<1x128xf32>
    %9 = arith.maximumf %5, %6 : vector<1x128xf32>
    %10 = arith.maximumf %9, %7 : vector<1x128xf32>
    %11 = arith.maximumf %10, %8 : vector<1x128xf32>
    %12 = arith.subf %5, %11 : vector<1x128xf32>
    %13 = math.exp %12 : vector<1x128xf32>
    %14 = arith.subf %6, %11 : vector<1x128xf32>
    %15 = math.exp %14 : vector<1x128xf32>
    %16 = arith.addf %13, %15 : vector<1x128xf32>
    %17 = arith.subf %7, %11 : vector<1x128xf32>
    %18 = math.exp %17 : vector<1x128xf32>
    %19 = arith.addf %16, %18 : vector<1x128xf32>
    %20 = arith.subf %8, %11 : vector<1x128xf32>
    %21 = math.exp %20 : vector<1x128xf32>
    %22 = arith.addf %19, %21 : vector<1x128xf32>
    %23 = math.log %22 : vector<1x128xf32>
    %24 = arith.addf %11, %23 : vector<1x128xf32>
    %c2_i32 = arith.constant 2 : i32
    %25 = vector.broadcast %c2_i32 : i32 to vector<1x128xi32>
    %26 = arith.cmpi eq, %3, %25 : vector<1x128xi32>
    %27 = arith.select %26, %7, %8 : vector<1x128xi1>, vector<1x128xf32>
    %c1_i32 = arith.constant 1 : i32
    %28 = vector.broadcast %c1_i32 : i32 to vector<1x128xi32>
    %29 = arith.cmpi eq, %3, %28 : vector<1x128xi32>
    %30 = arith.select %29, %6, %27 : vector<1x128xi1>, vector<1x128xf32>
    %c0_i32_9 = arith.constant 0 : i32
    %31 = vector.broadcast %c0_i32_9 : i32 to vector<1x128xi32>
    %32 = arith.cmpi eq, %3, %31 : vector<1x128xi32>
    %33 = arith.select %32, %5, %30 : vector<1x128xi1>, vector<1x128xf32>
    %34 = arith.subf %24, %33 : vector<1x128xf32>
    %35 = arith.mulf %34, %4 : vector<1x128xf32>
    %36 = vector.shape_cast %35 : vector<1x128xf32> to vector<1x1x128xf32>
    %cst = arith.constant dense<0.000000e+00> : vector<1xf32>
    %37 = vector.multi_reduction <add>, %36, %cst [1, 2] : vector<1x1x128xf32> to vector<1xf32>
    %38 = vector.shape_cast %37 : vector<1xf32> to vector<1x1x1xf32>
    %39 = vector.extract %38[0, 0, 0] : f32 from vector<1x1x1xf32>
    %c0_10 = arith.constant 0 : index
    %c0_11 = arith.constant 0 : index
    %40 = vector.load %arg6[%c0_10, %c0_11] : memref<1x128xf32, #tpu.memory_space<vmem>>, vector<1x128xf32>
    %c0_12 = arith.constant 0 : index
    %c0_13 = arith.constant 0 : index
    %41 = vector.load %arg4[%c0_12, %c0_13] : memref<4x128xf32, #tpu.memory_space<vmem>>, vector<1x128xf32>
    %c0_14 = arith.constant 0 : index
    %c0_15 = arith.constant 0 : index
    %42 = vector.load %arg5[%c0_14, %c0_15] : memref<4x128xf32, #tpu.memory_space<vmem>>, vector<1x128xf32>
    %43 = arith.subf %41, %42 : vector<1x128xf32>
    %44 = math.absf %43 : vector<1x128xf32>
    %cst_16 = arith.constant 1.000000e+00 : f32
    %45 = vector.broadcast %cst_16 : f32 to vector<1x128xf32>
    %46 = arith.cmpf olt, %44, %45 : vector<1x128xf32>
    %cst_17 = arith.constant 5.000000e-01 : f32
    %47 = vector.broadcast %cst_17 : f32 to vector<1x128xf32>
    %48 = arith.mulf %47, %43 : vector<1x128xf32>
    %49 = arith.mulf %48, %43 : vector<1x128xf32>
    %cst_18 = arith.constant 5.000000e-01 : f32
    %50 = vector.broadcast %cst_18 : f32 to vector<1x128xf32>
    %51 = arith.subf %44, %50 : vector<1x128xf32>
    %52 = arith.select %46, %49, %51 : vector<1x128xi1>, vector<1x128xf32>
    %c1_19 = arith.constant 1 : index
    %c0_20 = arith.constant 0 : index
    %53 = vector.load %arg4[%c1_19, %c0_20] : memref<4x128xf32, #tpu.memory_space<vmem>>, vector<1x128xf32>
    %c1_21 = arith.constant 1 : index
    %c0_22 = arith.constant 0 : index
    %54 = vector.load %arg5[%c1_21, %c0_22] : memref<4x128xf32, #tpu.memory_space<vmem>>, vector<1x128xf32>
    %55 = arith.subf %53, %54 : vector<1x128xf32>
    %56 = math.absf %55 : vector<1x128xf32>
    %cst_23 = arith.constant 1.000000e+00 : f32
    %57 = vector.broadcast %cst_23 : f32 to vector<1x128xf32>
    %58 = arith.cmpf olt, %56, %57 : vector<1x128xf32>
    %cst_24 = arith.constant 5.000000e-01 : f32
    %59 = vector.broadcast %cst_24 : f32 to vector<1x128xf32>
    %60 = arith.mulf %59, %55 : vector<1x128xf32>
    %61 = arith.mulf %60, %55 : vector<1x128xf32>
    %cst_25 = arith.constant 5.000000e-01 : f32
    %62 = vector.broadcast %cst_25 : f32 to vector<1x128xf32>
    %63 = arith.subf %56, %62 : vector<1x128xf32>
    %64 = arith.select %58, %61, %63 : vector<1x128xi1>, vector<1x128xf32>
    %65 = arith.addf %52, %64 : vector<1x128xf32>
    %c2_26 = arith.constant 2 : index
    %c0_27 = arith.constant 0 : index
    %66 = vector.load %arg4[%c2_26, %c0_27] : memref<4x128xf32, #tpu.memory_space<vmem>>, vector<1x128xf32>
    %c2_28 = arith.constant 2 : index
    %c0_29 = arith.constant 0 : index
    %67 = vector.load %arg5[%c2_28, %c0_29] : memref<4x128xf32, #tpu.memory_space<vmem>>, vector<1x128xf32>
    %68 = arith.subf %66, %67 : vector<1x128xf32>
    %69 = math.absf %68 : vector<1x128xf32>
    %cst_30 = arith.constant 1.000000e+00 : f32
    %70 = vector.broadcast %cst_30 : f32 to vector<1x128xf32>
    %71 = arith.cmpf olt, %69, %70 : vector<1x128xf32>
    %cst_31 = arith.constant 5.000000e-01 : f32
    %72 = vector.broadcast %cst_31 : f32 to vector<1x128xf32>
    %73 = arith.mulf %72, %68 : vector<1x128xf32>
    %74 = arith.mulf %73, %68 : vector<1x128xf32>
    %cst_32 = arith.constant 5.000000e-01 : f32
    %75 = vector.broadcast %cst_32 : f32 to vector<1x128xf32>
    %76 = arith.subf %69, %75 : vector<1x128xf32>
    %77 = arith.select %71, %74, %76 : vector<1x128xi1>, vector<1x128xf32>
    %78 = arith.addf %65, %77 : vector<1x128xf32>
    %c3_33 = arith.constant 3 : index
    %c0_34 = arith.constant 0 : index
    %79 = vector.load %arg4[%c3_33, %c0_34] : memref<4x128xf32, #tpu.memory_space<vmem>>, vector<1x128xf32>
    %c3_35 = arith.constant 3 : index
    %c0_36 = arith.constant 0 : index
    %80 = vector.load %arg5[%c3_35, %c0_36] : memref<4x128xf32, #tpu.memory_space<vmem>>, vector<1x128xf32>
    %81 = arith.subf %79, %80 : vector<1x128xf32>
    %82 = math.absf %81 : vector<1x128xf32>
    %cst_37 = arith.constant 1.000000e+00 : f32
    %83 = vector.broadcast %cst_37 : f32 to vector<1x128xf32>
    %84 = arith.cmpf olt, %82, %83 : vector<1x128xf32>
    %cst_38 = arith.constant 5.000000e-01 : f32
    %85 = vector.broadcast %cst_38 : f32 to vector<1x128xf32>
    %86 = arith.mulf %85, %81 : vector<1x128xf32>
    %87 = arith.mulf %86, %81 : vector<1x128xf32>
    %cst_39 = arith.constant 5.000000e-01 : f32
    %88 = vector.broadcast %cst_39 : f32 to vector<1x128xf32>
    %89 = arith.subf %82, %88 : vector<1x128xf32>
    %90 = arith.select %84, %87, %89 : vector<1x128xi1>, vector<1x128xf32>
    %91 = arith.addf %78, %90 : vector<1x128xf32>
    %92 = arith.mulf %91, %40 : vector<1x128xf32>
    %93 = vector.shape_cast %92 : vector<1x128xf32> to vector<1x1x128xf32>
    %cst_40 = arith.constant dense<0.000000e+00> : vector<1xf32>
    %94 = vector.multi_reduction <add>, %93, %cst_40 [1, 2] : vector<1x1x128xf32> to vector<1xf32>
    %95 = vector.shape_cast %94 : vector<1xf32> to vector<1x1x1xf32>
    %96 = vector.extract %95[0, 0, 0] : f32 from vector<1x1x1xf32>
    %c0_41 = arith.constant 0 : index
    %97 = memref.load %arg8[%c0_41] : memref<2xf32, #tpu.memory_space<smem>>
    %98 = arith.addf %97, %39 : f32
    %c0_42 = arith.constant 0 : index
    %99 = memref.load %arg8[%c0_42] : memref<2xf32, #tpu.memory_space<smem>>
    memref.store %98, %arg8[%c0_42] : memref<2xf32, #tpu.memory_space<smem>>
    %c1_43 = arith.constant 1 : index
    %100 = memref.load %arg8[%c1_43] : memref<2xf32, #tpu.memory_space<smem>>
    %101 = arith.addf %100, %96 : f32
    %c1_44 = arith.constant 1 : index
    %102 = memref.load %arg8[%c1_44] : memref<2xf32, #tpu.memory_space<smem>>
    memref.store %101, %arg8[%c1_44] : memref<2xf32, #tpu.memory_space<smem>>
    %c0_i32_45 = arith.constant 0 : i32
    %103 = arith.cmpi eq, %arg0, %c0_i32_45 : i32
    %104 = arith.extui %103 : i1 to i32
    %c0_i32_46 = arith.constant 0 : i32
    %105 = arith.cmpi ne, %104, %c0_i32_46 : i32
    scf.if %105 {
      %c0_47 = arith.constant 0 : index
      %106 = memref.load %arg8[%c0_47] : memref<2xf32, #tpu.memory_space<smem>>
      %cst_48 = arith.constant 7.812500e-03 : f32
      %107 = arith.mulf %106, %cst_48 : f32
      %c1_49 = arith.constant 1 : index
      %108 = memref.load %arg8[%c1_49] : memref<2xf32, #tpu.memory_space<smem>>
      %cst_50 = arith.constant 0.001953125 : f32
      %109 = arith.mulf %108, %cst_50 : f32
      %110 = arith.addf %107, %109 : f32
      %c0_51 = arith.constant 0 : index
      %111 = memref.load %arg7[%c0_51] : memref<3xf32, #tpu.memory_space<smem>>
      memref.store %110, %arg7[%c0_51] : memref<3xf32, #tpu.memory_space<smem>>
      %c1_52 = arith.constant 1 : index
      %112 = memref.load %arg7[%c1_52] : memref<3xf32, #tpu.memory_space<smem>>
      memref.store %107, %arg7[%c1_52] : memref<3xf32, #tpu.memory_space<smem>>
      %c2_53 = arith.constant 2 : index
      %113 = memref.load %arg7[%c2_53] : memref<3xf32, #tpu.memory_space<smem>>
      memref.store %109, %arg7[%c2_53] : memref<3xf32, #tpu.memory_space<smem>>
    } else {
    }
    return
  }
  func.func @transform_0(%arg0: i32) -> (i32, i32) {
    %c0_i32 = arith.constant 0 : i32
    %c0_i32_0 = arith.constant 0 : i32
    return %c0_i32, %arg0 : i32, i32
  }
  func.func @transform_1(%arg0: i32) -> (i32, i32) {
    %c0_i32 = arith.constant 0 : i32
    %c0_i32_0 = arith.constant 0 : i32
    return %c0_i32, %arg0 : i32, i32
  }
  func.func @transform_2(%arg0: i32) -> (i32, i32) {
    %c0_i32 = arith.constant 0 : i32
    %c0_i32_0 = arith.constant 0 : i32
    return %c0_i32, %arg0 : i32, i32
  }
  func.func @transform_3(%arg0: i32) -> (i32, i32) {
    %c0_i32 = arith.constant 0 : i32
    %c0_i32_0 = arith.constant 0 : i32
    return %c0_i32, %arg0 : i32, i32
  }
  func.func @transform_4(%arg0: i32) -> (i32, i32) {
    %c0_i32 = arith.constant 0 : i32
    %c0_i32_0 = arith.constant 0 : i32
    return %c0_i32, %arg0 : i32, i32
  }
  func.func @transform_5(%arg0: i32) -> (i32, i32) {
    %c0_i32 = arith.constant 0 : i32
    %c0_i32_0 = arith.constant 0 : i32
    return %c0_i32, %arg0 : i32, i32
  }
  func.func @transform_6(%arg0: i32) -> i32 {
    %c0_i32 = arith.constant 0 : i32
    %c0_i32_0 = arith.constant 0 : i32
    return %c0_i32 : i32
  }
}

</mosaic_0001>

<llo_original>
// kernel: tpu_custom_call.1
$region0: #{tpu_custom_call.1}
  #allocation0 [shape = 'u32[]', space=smem, size = 0x4, offset = 0x4, fixed_abs, tag = 'smem constant byte address 0x4 - core index']
  #allocation1 [shape = 'u32[144,128]{1,0:T(1,128)}', space=vmem, size = 0x12000, scoped, tag = 'internal scratch']
  #allocation2 [shape = 'f32[2]{0:T(128)}', space=smem, size = 0x200, scoped, tag = 'scratch operand']
  %s0 = inlined_call_operand.hbm [shape: f32[4,128], index: 0, kind: input, shape index: {}]
  %s1 = inlined_call_operand.vmem [shape: s32[1,128], index: 1, kind: input, shape index: {}]
  %s2 = inlined_call_operand.vmem [shape: f32[1,128], index: 2, kind: input, shape index: {}]
  %s3 = inlined_call_operand.vmem [shape: f32[4,128], index: 3, kind: input, shape index: {}]
  %s4 = inlined_call_operand.vmem [shape: f32[4,128], index: 4, kind: input, shape index: {}]
  %s5 = inlined_call_operand.vmem [shape: f32[1,128], index: 5, kind: input, shape index: {}]
  %s6 = inlined_call_operand.hbm [shape: f32[3], index: 6, kind: output, shape index: {}]
  %s7 = sld [smem:[#allocation0]]
  $region46: #{tpu_custom_call.1} parent=0
    _
  %s9 = ssub.s32 1, %s7
  %s10 = scalar_select 0, %s9, %s7
  $region1: #{tpu_custom_call.1} parent=0
    #allocation3 [shape = 'u8[2048]{0}', space=vmem, size = 0x800, scoped, tag = 'input window, operand 0, single buffered']
    #allocation4 [shape = 's32[1]{0}', space=sflag, size = 0x4, scoped, tag = 'scoped memory for tpu_custom_call.1']
    #allocation5 [shape = 's32[1]{0}', space=sflag, size = 0x4, scoped, tag = 'scoped memory for tpu_custom_call.1']
    #allocation6 [shape = 'u8[512]{0}', space=smem, size = 0x200, scoped, tag = 'output window, operand 0, single buffered']
    %11 = vsyncpa [#allocation4], 0
    %12 = vsyncpa [#allocation5], 0
    // Predicated region
    $region2: #{tpu_custom_call.1} parent=1 // pred_check
      _
    $region3: #{tpu_custom_call.1} parent=1 // pred_check_branch
      %14 = sbr.rel (0) target = $region5
    $region4: #{tpu_custom_call.1} parent=1 // pred_region
      %s16 = ssub.s32 64, 64
      %17 = vsyncadd [#allocation4], %s16
      %s19 = sshll.u32 [#allocation3], 4
      %s20 = int_to_ptr.vmem [resolvable:$true] %s19
      %22 = dma.hbm_to_vmem [thread:$0]  %s0, 64, %s20, [#allocation4]
    $region5: #{tpu_custom_call.1} parent=1 // pred_fallthru
      _
    // Predicated region
    $region6: #{tpu_custom_call.1} parent=1 // pred_check
      _
    $region7: #{tpu_custom_call.1} parent=1 // pred_check_branch
      %24 = sbr.rel (0) target = $region9
    $region8: #{tpu_custom_call.1} parent=1 // pred_region
      _
    $region9: #{tpu_custom_call.1} parent=1 // pred_fallthru
      _
    // Predicated region
    $region10: #{tpu_custom_call.1} parent=1 // pred_check
      _
    $region11: #{tpu_custom_call.1} parent=1 // pred_check_branch
      %26 = sbr.rel (0) target = $region13
    $region12: #{tpu_custom_call.1} parent=1 // pred_region
      _
    $region13: #{tpu_custom_call.1} parent=1 // pred_fallthru
      _
    // Predicated region
    $region14: #{tpu_custom_call.1} parent=1 // pred_check
      _
    $region15: #{tpu_custom_call.1} parent=1 // pred_check_branch
      %28 = sbr.rel (0) target = $region17
    $region16: #{tpu_custom_call.1} parent=1 // pred_region
      _
    $region17: #{tpu_custom_call.1} parent=1 // pred_fallthru
      _
    // Predicated region
    $region18: #{tpu_custom_call.1} parent=1 // pred_check
      _
    $region19: #{tpu_custom_call.1} parent=1 // pred_check_branch
      %30 = sbr.rel (0) target = $region21
    $region20: #{tpu_custom_call.1} parent=1 // pred_region
      _
    $region21: #{tpu_custom_call.1} parent=1 // pred_fallthru
      _
    // Predicated region
    $region22: #{tpu_custom_call.1} parent=1 // pred_check
      _
    $region23: #{tpu_custom_call.1} parent=1 // pred_check_branch
      %32 = sbr.rel (0) target = $region25
    $region24: #{tpu_custom_call.1} parent=1 // pred_region
      _
    $region25: #{tpu_custom_call.1} parent=1 // pred_fallthru
      _
    // Predicated region
    $region26: #{tpu_custom_call.1} parent=1 // pred_check
      _
    $region27: #{tpu_custom_call.1} parent=1 // pred_check_branch
      %34 = sbr.rel (0) target = $region29
    $region28: #{tpu_custom_call.1} parent=1 // pred_region
      %35 = dma.done [#allocation4], 64
    $region29: #{tpu_custom_call.1} parent=1 // pred_fallthru
      _
    %p36 = scmp.eq.s32.totalorder 0, 0
    // Predicated region
    $region30: #{tpu_custom_call.1} parent=1 // pred_check
      %p37 = pneg %p36
    $region31: #{tpu_custom_call.1} parent=1 // pred_check_branch
      %39 = sbr.rel (%p37) target = $region33
    $region32: #{tpu_custom_call.1} parent=1 // pred_region
      %s40 = scalar_lea.smem [#allocation2], 0
      %41 = sst [smem:[%s40]] 0.0
      %s42 = scalar_lea.smem [#allocation2], 1
      %43 = sst [smem:[%s42]] 0.0
    $region33: #{tpu_custom_call.1} parent=1 // pred_fallthru
      _
    %v44 = vld [vmem:[%s1] sm:$0x1]
    %v45 = vld [vmem:[%s2] sm:$0x1]
    %v46 = vld [vmem:[#allocation3] sm:$0x1]
    %v47 = vld [vmem:[#allocation3 + $0x1] sm:$0x1]
    %v48 = vld [vmem:[#allocation3 + $0x2] sm:$0x1]
    %v49 = vld [vmem:[#allocation3 + $0x3] sm:$0x1]
    %v50 = vmax.f32 %v46, %v47
    %v51 = vmax.f32 %v50, %v48
    %v52 = vmax.f32 %v51, %v49
    %v53 = vsub.f32 %v46, %v52
    %v54 = vmul.f32 %v53, 1.442695
    %v55 = vpow.pop %v54
    %v56 = vsub.f32 %v47, %v52
    %v57 = vmul.f32 %v56, 1.442695
    %v58 = vpow.pop %v57
    %v59 = vadd.f32 %v55, %v58
    %v60 = vsub.f32 %v48, %v52
    %v61 = vmul.f32 %v60, 1.442695
    %v62 = vpow.pop %v61
    %v63 = vadd.f32 %v59, %v62
    %v64 = vsub.f32 %v49, %v52
    %v65 = vmul.f32 %v64, 1.442695
    %v66 = vpow.pop %v65
    %v67 = vadd.f32 %v63, %v66
    %v68 = vlog2.pop %v67
    %v69 = vmul.f32 %v68, 0.6931472
    %v70 = vadd.f32 %v52, %v69
    %vm71 = vcmp.eq.s32.totalorder %v44, 2
    %v72 = vsel %vm71, %v48, %v49
    %vm73 = vcmp.eq.s32.totalorder %v44, 1
    %v74 = vsel %vm73, %v47, %v72
    %vm75 = vcmp.eq.s32.totalorder %v44, 0
    %v76 = vsel %vm75, %v46, %v74
    %v77 = vsub.f32 %v70, %v76
    %v78 = vmul.f32 %v77, %v45
    %vm79 = vcmask 1040384
    %v80 = vsel %vm79, %v78, 0.0
    %81 = vadd.xlane.f32.xlu0 %v80
    %v82 = vpop.xlane.xlu0 %81
    %v83 = vrot.slane %v82, 4
    %v84 = vadd.f32 %v82, %v83
    %v85 = vrot.slane %v84, 2
    %v86 = vadd.f32 %v84, %v85
    %v87 = vrot.slane %v86, 1
    %v88 = vadd.f32 %v86, %v87
    %s89 = vtos %v88
    %v90 = vld [vmem:[%s5] sm:$0x1]
    %v91 = vld [vmem:[%s3] sm:$0x1]
    %v92 = vld [vmem:[%s4] sm:$0x1]
    %v93 = vsub.f32 %v91, %v92
    %v94 = vand.u32 2147483647, %v93
    %vm95 = vcmp.lt.f32.partialorder %v94, 1.0
    %v96 = vmul.f32 %v93, 0.5
    %v97 = vmul.f32 %v96, %v93
    %v98 = vsub.f32 %v94, 0.5
    %v99 = vsel %vm95, %v97, %v98
    %v100 = vld [vmem:[%s3 + $0x1] sm:$0x1]
    %v101 = vld [vmem:[%s4 + $0x1] sm:$0x1]
    %v102 = vsub.f32 %v100, %v101
    %v103 = vand.u32 2147483647, %v102
    %vm104 = vcmp.lt.f32.partialorder %v103, 1.0
    %v105 = vmul.f32 %v102, 0.5
    %v106 = vmul.f32 %v105, %v102
    %v107 = vsub.f32 %v103, 0.5
    %v108 = vsel %vm104, %v106, %v107
    %v109 = vadd.f32 %v99, %v108
    %v110 = vld [vmem:[%s3 + $0x2] sm:$0x1]
    %v111 = vld [vmem:[%s4 + $0x2] sm:$0x1]
    %v112 = vsub.f32 %v110, %v111
    %v113 = vand.u32 2147483647, %v112
    %vm114 = vcmp.lt.f32.partialorder %v113, 1.0
    %v115 = vmul.f32 %v112, 0.5
    %v116 = vmul.f32 %v115, %v112
    %v117 = vsub.f32 %v113, 0.5
    %v118 = vsel %vm114, %v116, %v117
    %v119 = vadd.f32 %v109, %v118
    %v120 = vld [vmem:[%s3 + $0x3] sm:$0x1]
    %v121 = vld [vmem:[%s4 + $0x3] sm:$0x1]
    %v122 = vsub.f32 %v120, %v121
    %v123 = vand.u32 2147483647, %v122
    %vm124 = vcmp.lt.f32.partialorder %v123, 1.0
    %v125 = vmul.f32 %v122, 0.5
    %v126 = vmul.f32 %v125, %v122
    %v127 = vsub.f32 %v123, 0.5
    %v128 = vsel %vm124, %v126, %v127
    %v129 = vadd.f32 %v119, %v128
    %v130 = vmul.f32 %v129, %v90
    %v131 = vsel %vm79, %v130, 0.0
    %132 = vadd.xlane.f32.xlu0 %v131
    %v133 = vpop.xlane.xlu0 %132
    %v134 = vrot.slane %v133, 4
    %v135 = vadd.f32 %v133, %v134
    %v136 = vrot.slane %v135, 2
    %v137 = vadd.f32 %v135, %v136
    %v138 = vrot.slane %v137, 1
    %v139 = vadd.f32 %v137, %v138
    %s140 = vtos %v139
    %s141 = sld [smem:[#allocation2]]
    %s142 = sadd.f32 %s141, %s89
    %s143 = scalar_lea.smem [#allocation2], 0
    %144 = sst [smem:[%s143]] %s142
    %s145 = sld [smem:[#allocation2 + $0x1]]
    %s146 = sadd.f32 %s145, %s140
    %s147 = scalar_lea.smem [#allocation2], 1
    %148 = sst [smem:[%s147]] %s146
    // Predicated region
    $region34: #{tpu_custom_call.1} parent=1 // pred_check
      %p149 = pneg %p36
    $region35: #{tpu_custom_call.1} parent=1 // pred_check_branch
      %151 = sbr.rel (%p149) target = $region37
    $region36: #{tpu_custom_call.1} parent=1 // pred_region
      %s152 = sld [smem:[#allocation2]]
      %s153 = smul.f32 %s152, 0.0078125
      %s154 = sld [smem:[#allocation2 + $0x1]]
      %s155 = smul.f32 %s154, 0.001953125
      %s156 = sadd.f32 %s153, %s155
      %s157 = scalar_lea.smem [#allocation6], 0
      %158 = sst [smem:[%s157]] %s156
      %s159 = scalar_lea.smem [#allocation6], 1
      %160 = sst [smem:[%s159]] %s153
      %s161 = scalar_lea.smem [#allocation6], 2
      %162 = sst [smem:[%s161]] %s155
    $region37: #{tpu_custom_call.1} parent=1 // pred_fallthru
      _
    // Predicated region
    $region38: #{tpu_custom_call.1} parent=1 // pred_check
      _
    $region39: #{tpu_custom_call.1} parent=1 // pred_check_branch
      %164 = sbr.rel (0) target = $region41
    $region40: #{tpu_custom_call.1} parent=1 // pred_region
      %s166 = ssub.s32 16, 16
      %167 = vsyncadd [#allocation5], %s166
      %170 = dma.smem_to_hbm [#allocation6], 16, %s6, [#allocation5]
    $region41: #{tpu_custom_call.1} parent=1 // pred_fallthru
      _
    // Predicated region
    $region42: #{tpu_custom_call.1} parent=1 // pred_check
      _
    $region43: #{tpu_custom_call.1} parent=1 // pred_check_branch
      %172 = sbr.rel (0) target = $region45
    $region44: #{tpu_custom_call.1} parent=1 // pred_region
      %173 = dma.done [#allocation5], 16
    $region45: #{tpu_custom_call.1} parent=1 // pred_fallthru
      _
    %174 = sfence
    %175 = vsyncpa [#allocation4], 1
    %176 = vsyncpa [#allocation5], 1

</llo_original>
